<compile_context>
chip_gen: v5e
topology: v5e:2x2
jax: 0.10.0
libtpu: 0.0.40
codegen_flags: <defaults>
</compile_context>

<pallas_src>
import functools
import math
from functools import reduce

import jax
import jax.numpy as jnp
from jax.experimental import pallas as pl
from jax.experimental.pallas import tpu as pltpu


def _make_kernel(g_tile, L, mults, n_windows):
    """Kernel over one (g_tile, L, base) tile of y_hat / y for one batch item."""
    n_losses = len(mults)

    def kernel(yh_ref, yt_ref, out_ref):
        # yh_ref / yt_ref: (g_tile, L, base) VMEM tiles; out_ref: (1, n_losses) SMEM.
        t = pl.program_id(1)
        # Global super-group index of every row in this tile: (g_tile, 1).
        super_idx = t * g_tile + jax.lax.broadcasted_iota(jnp.int32, (g_tile, 1), 0)

        # Single pass over the samples: max of |x| over each base frame (lanes).
        ph = jnp.max(jnp.abs(yh_ref[...]), axis=-1).astype(jnp.float32)  # (g_tile, L)
        pt = jnp.max(jnp.abs(yt_ref[...]), axis=-1).astype(jnp.float32)  # (g_tile, L)

        for i in range(n_losses):
            m = mults[i]            # window length = m * base samples
            gps = L // m            # windows per super group
            n_valid = n_windows[i]  # true number of windows (static, = T // winlen)
            if m == 1:
                # Base-length windows: every pooled frame is already a window.
                d = jnp.abs(ph - pt)                                     # (g_tile, L)
                widx = super_idx * L + jax.lax.broadcasted_iota(
                    jnp.int32, (g_tile, L), 1)
                acc = jnp.sum(jnp.where(widx < n_valid, d, 0.0))
            else:
                acc = jnp.zeros((), jnp.float32)
                for g in range(gps):
                    # Hierarchical max over m adjacent pooled base frames.
                    wh = jnp.max(ph[:, g * m:(g + 1) * m], axis=-1, keepdims=True)
                    wt = jnp.max(pt[:, g * m:(g + 1) * m], axis=-1, keepdims=True)
                    d = jnp.abs(wh - wt)                                 # (g_tile, 1)
                    widx = super_idx * gps + g
                    acc = acc + jnp.sum(jnp.where(widx < n_valid, d, 0.0))
            out_ref[0, i] = acc

    return kernel


@functools.partial(jax.jit, static_argnames=("winlens",))
def multi_window_shape_loss(y_hat, y, winlens=(300, 200, 100)):
    """JAX/Pallas equivalent of MultiWindowShapeLoss.forward.

    Args:
        y_hat: (B, 1, T) generated waveform.
        y:     (B, 1, T) ground-truth waveform.
        winlens: tuple of max-pool window lengths.

    Returns:
        Scalar float32 loss.
    """
    B, C, T = y_hat.shape
    assert C == 1, "module expects single-channel (B, 1, T) inputs"
    assert y.shape == y_hat.shape
    winlens = tuple(int(w) for w in winlens)
    n_losses = len(winlens)

    base = reduce(math.gcd, winlens)                 # smallest common frame
    mults = tuple(w // base for w in winlens)        # winlen in base frames
    L = reduce(lambda a, b: a * b // math.gcd(a, b), mults, 1)  # frames / super group
    assert L * base <= (1 << 16), "pathological winlens: lcm too large for one tile row"

    n_windows = tuple(T // w for w in winlens)       # true window counts per winlen
    assert min(n_windows) >= 1, f"T={T} shorter than the largest window"

    n_frames = T // base                             # base frames backed by real data
    n_super = -(-n_frames // L)                      # super groups (ceil)

    # Tile over super groups. Leading block dims carry no (8,128) constraint, so
    # G_TILE is chosen only for VMEM footprint / DMA efficiency (~1 MiB/buffer).
    G_CAP = 256
    num_tiles = max(1, -(-n_super // G_CAP))
    G_TILE = -(-n_super // num_tiles)
    n_super_pad = num_tiles * G_TILE

    t_keep = n_frames * base
    t_pad = n_super_pad * L * base

    def prep(x):
        x2 = x.reshape(B, T)[:, :t_keep]
        if t_pad != t_keep:
            # Zero padding is safe: padded frames pool to |0| = 0 for BOTH inputs,
            # and any window touching real-but-out-of-range tail frames is masked
            # in-kernel via the static true window counts.
            x2 = jnp.pad(x2, ((0, 0), (0, t_pad - t_keep)))
        return x2.reshape(B, n_super_pad, L, base)

    yh = prep(y_hat)
    yt = prep(y)

    itemsize = jnp.dtype(y_hat.dtype).itemsize
    bytes_accessed = 2 * B * t_pad * itemsize + B * num_tiles * n_losses * 4
    flops = 4 * B * t_pad + 8 * B * n_super_pad * L * n_losses

    kernel = _make_kernel(G_TILE, L, mults, n_windows)
    partial = pl.pallas_call(
        kernel,
        out_shape=jax.ShapeDtypeStruct((B * num_tiles, 1, n_losses), jnp.float32),
        grid=(B, num_tiles),
        in_specs=[
            pl.BlockSpec((None, G_TILE, L, base), lambda b, t: (b, t, 0, 0)),
            pl.BlockSpec((None, G_TILE, L, base), lambda b, t: (b, t, 0, 0)),
        ],
        out_specs=pl.BlockSpec(
            (None, 1, n_losses),
            lambda b, t: (b * num_tiles + t, 0, 0),
            memory_space=pltpu.MemorySpace.SMEM,
        ),
        compiler_params=pltpu.CompilerParams(
            dimension_semantics=("parallel", "parallel")),
        cost_estimate=pl.CostEstimate(
            flops=flops, transcendentals=0, bytes_accessed=bytes_accessed),
    )(yh, yt)

    # Per-window-length sums -> means with the TRUE element counts, then average.
    sums = jnp.sum(partial, axis=(0, 1))                       # (n_losses,)
    counts = jnp.asarray([B * n for n in n_windows], jnp.float32)
    return jnp.mean(sums / counts)


def _reference(y_hat, y, winlens=(300, 200, 100)):
    """Pure-JAX reference mirroring the PyTorch module."""
    B, C, T = y_hat.shape
    yh = y_hat.reshape(B, T).astype(jnp.float32)
    yt = y.reshape(B, T).astype(jnp.float32)
    loss = 0.0
    for wl in winlens:
        n = T // wl
        ph = jnp.max(jnp.abs(yh[:, : n * wl].reshape(B, n, wl)), axis=-1)
        pt = jnp.max(jnp.abs(yt[:, : n * wl].reshape(B, n, wl)), axis=-1)
        loss = loss + jnp.mean(jnp.abs(ph - pt))
    return loss / len(winlens)


if __name__ == "__main__":
    winlens = (300, 200, 100)
    root_key = jax.random.PRNGKey(0)

    def run_case(B, T, case_id):
        k1, k2 = jax.random.split(jax.random.fold_in(root_key, case_id))
        y_hat = jax.random.normal(k1, (B, 1, T), dtype=jnp.float32)
        y = jax.random.normal(k2, (B, 1, T), dtype=jnp.float32)
        out = jax.block_until_ready(
            multi_window_shape_loss(y_hat, y, winlens=winlens))
        ref = jax.block_until_ready(_reference(y_hat, y, winlens))
        assert jnp.allclose(out, ref, rtol=1e-4, atol=1e-6), (B, T, out, ref)

    # Small, aligned case (T divisible by lcm(winlens)=600): single tile.
    run_case(B=2, T=2400, case_id=0)
    # Unaligned case: exercises tail truncation + zero padding + window masking.
    run_case(B=3, T=2500, case_id=1)
    # Larger, unaligned, multi-tile case: exercises the (B, num_tiles) grid and
    # the per-tile partial-sum outputs.
    run_case(B=2, T=160001, case_id=2)

    print("KERNEL_OK")
</pallas_src>

<mosaic_0001>
module attributes {stable_mosaic.version = 11 : i64} {
  func.func @kernel(%arg0: i32, %arg1: i32, %arg2: memref<1x4x6x100xf32, #tpu.memory_space<vmem>>, %arg3: memref<1x4x6x100xf32, #tpu.memory_space<vmem>>, %arg4: memref<1x1x3xf32, #tpu.memory_space<smem>>) attributes {dimension_semantics = [#tpu.dimension_semantics<parallel>, #tpu.dimension_semantics<parallel>], iteration_bounds = array<i64: 2, 1>, scalar_prefetch = 0 : i64, scratch_operands = 0 : i64, tpu.core_type = #tpu.core_type<tc>, window_params = [{transform_indices = @transform_0, window_bounds = array<i64: 1, 4, 6, 100>}, {transform_indices = @transform_1, window_bounds = array<i64: 1, 4, 6, 100>}, {transform_indices = @transform_2, window_bounds = array<i64: 1, 1, 3>}]} {
    %c4_i32 = arith.constant 4 : i32
    %0 = arith.muli %arg1, %c4_i32 : i32
    %1 = tpu.iota {dimensions = array<i32: 0>} : vector<4x1xi32>
    %2 = vector.broadcast %0 : i32 to vector<4x1xi32>
    %3 = arith.addi %2, %1 : vector<4x1xi32>
    %c0 = arith.constant 0 : index
    %c0_0 = arith.constant 0 : index
    %c0_1 = arith.constant 0 : index
    %c0_2 = arith.constant 0 : index
    %4 = vector.load %arg2[%c0, %c0_0, %c0_1, %c0_2] : memref<1x4x6x100xf32, #tpu.memory_space<vmem>>, vector<1x4x6x100xf32>
    %5 = vector.shape_cast %4 : vector<1x4x6x100xf32> to vector<4x6x100xf32>
    %6 = math.absf %5 : vector<4x6x100xf32>
    %cst = arith.constant dense<0xFF800000> : vector<4x6xf32>
    %7 = vector.multi_reduction <maximumf>, %6, %cst [2] : vector<4x6x100xf32> to vector<4x6xf32>
    %c0_3 = arith.constant 0 : index
    %c0_4 = arith.constant 0 : index
    %c0_5 = arith.constant 0 : index
    %c0_6 = arith.constant 0 : index
    %8 = vector.load %arg3[%c0_3, %c0_4, %c0_5, %c0_6] : memref<1x4x6x100xf32, #tpu.memory_space<vmem>>, vector<1x4x6x100xf32>
    %9 = vector.shape_cast %8 : vector<1x4x6x100xf32> to vector<4x6x100xf32>
    %10 = math.absf %9 : vector<4x6x100xf32>
    %cst_7 = arith.constant dense<0xFF800000> : vector<4x6xf32>
    %11 = vector.multi_reduction <maximumf>, %10, %cst_7 [2] : vector<4x6x100xf32> to vector<4x6xf32>
    %12 = vector.extract_strided_slice %7 {offsets = [0, 0], sizes = [4, 3], strides = [1, 1]} : vector<4x6xf32> to vector<4x3xf32>
    %cst_8 = arith.constant dense<0xFF800000> : vector<4xf32>
    %13 = vector.multi_reduction <maximumf>, %12, %cst_8 [1] : vector<4x3xf32> to vector<4xf32>
    %14 = vector.shape_cast %13 : vector<4xf32> to vector<4x1xf32>
    %15 = vector.extract_strided_slice %11 {offsets = [0, 0], sizes = [4, 3], strides = [1, 1]} : vector<4x6xf32> to vector<4x3xf32>
    %cst_9 = arith.constant dense<0xFF800000> : vector<4xf32>
    %16 = vector.multi_reduction <maximumf>, %15, %cst_9 [1] : vector<4x3xf32> to vector<4xf32>
    %17 = vector.shape_cast %16 : vector<4xf32> to vector<4x1xf32>
    %18 = arith.subf %14, %17 : vector<4x1xf32>
    %19 = math.absf %18 : vector<4x1xf32>
    %c2_i32 = arith.constant 2 : i32
    %20 = vector.broadcast %c2_i32 : i32 to vector<4x1xi32>
    %21 = arith.muli %3, %20 : vector<4x1xi32>
    %c0_i32 = arith.constant 0 : i32
    %22 = vector.broadcast %c0_i32 : i32 to vector<4x1xi32>
    %23 = arith.addi %21, %22 : vector<4x1xi32>
    %c8_i32 = arith.constant 8 : i32
    %24 = vector.broadcast %c8_i32 : i32 to vector<4x1xi32>
    %25 = arith.cmpi slt, %23, %24 : vector<4x1xi32>
    %cst_10 = arith.constant 0.000000e+00 : f32
    %26 = vector.broadcast %cst_10 : f32 to vector<4x1xf32>
    %27 = arith.select %25, %19, %26 : vector<4x1xi1>, vector<4x1xf32>
    %28 = vector.shape_cast %27 : vector<4x1xf32> to vector<1x4x1xf32>
    %cst_11 = arith.constant dense<0.000000e+00> : vector<1xf32>
    %29 = vector.multi_reduction <add>, %28, %cst_11 [1, 2] : vector<1x4x1xf32> to vector<1xf32>
    %30 = vector.shape_cast %29 : vector<1xf32> to vector<1x1x1xf32>
    %31 = vector.extract %30[0, 0, 0] : f32 from vector<1x1x1xf32>
    %cst_12 = arith.constant 0.000000e+00 : f32
    %32 = arith.addf %cst_12, %31 : f32
    %33 = vector.extract_strided_slice %7 {offsets = [0, 3], sizes = [4, 3], strides = [1, 1]} : vector<4x6xf32> to vector<4x3xf32>
    %cst_13 = arith.constant dense<0xFF800000> : vector<4xf32>
    %34 = vector.multi_reduction <maximumf>, %33, %cst_13 [1] : vector<4x3xf32> to vector<4xf32>
    %35 = vector.shape_cast %34 : vector<4xf32> to vector<4x1xf32>
    %36 = vector.extract_strided_slice %11 {offsets = [0, 3], sizes = [4, 3], strides = [1, 1]} : vector<4x6xf32> to vector<4x3xf32>
    %cst_14 = arith.constant dense<0xFF800000> : vector<4xf32>
    %37 = vector.multi_reduction <maximumf>, %36, %cst_14 [1] : vector<4x3xf32> to vector<4xf32>
    %38 = vector.shape_cast %37 : vector<4xf32> to vector<4x1xf32>
    %39 = arith.subf %35, %38 : vector<4x1xf32>
    %40 = math.absf %39 : vector<4x1xf32>
    %c2_i32_15 = arith.constant 2 : i32
    %41 = vector.broadcast %c2_i32_15 : i32 to vector<4x1xi32>
    %42 = arith.muli %3, %41 : vector<4x1xi32>
    %c1_i32 = arith.constant 1 : i32
    %43 = vector.broadcast %c1_i32 : i32 to vector<4x1xi32>
    %44 = arith.addi %42, %43 : vector<4x1xi32>
    %c8_i32_16 = arith.constant 8 : i32
    %45 = vector.broadcast %c8_i32_16 : i32 to vector<4x1xi32>
    %46 = arith.cmpi slt, %44, %45 : vector<4x1xi32>
    %cst_17 = arith.constant 0.000000e+00 : f32
    %47 = vector.broadcast %cst_17 : f32 to vector<4x1xf32>
    %48 = arith.select %46, %40, %47 : vector<4x1xi1>, vector<4x1xf32>
    %49 = vector.shape_cast %48 : vector<4x1xf32> to vector<1x4x1xf32>
    %cst_18 = arith.constant dense<0.000000e+00> : vector<1xf32>
    %50 = vector.multi_reduction <add>, %49, %cst_18 [1, 2] : vector<1x4x1xf32> to vector<1xf32>
    %51 = vector.shape_cast %50 : vector<1xf32> to vector<1x1x1xf32>
    %52 = vector.extract %51[0, 0, 0] : f32 from vector<1x1x1xf32>
    %53 = arith.addf %32, %52 : f32
    %c0_19 = arith.constant 0 : index
    %c0_20 = arith.constant 0 : index
    %c0_21 = arith.constant 0 : index
    %54 = memref.load %arg4[%c0_19, %c0_20, %c0_21] : memref<1x1x3xf32, #tpu.memory_space<smem>>
    memref.store %53, %arg4[%c0_19, %c0_20, %c0_21] : memref<1x1x3xf32, #tpu.memory_space<smem>>
    %55 = vector.extract_strided_slice %7 {offsets = [0, 0], sizes = [4, 2], strides = [1, 1]} : vector<4x6xf32> to vector<4x2xf32>
    %cst_22 = arith.constant dense<0xFF800000> : vector<4xf32>
    %56 = vector.multi_reduction <maximumf>, %55, %cst_22 [1] : vector<4x2xf32> to vector<4xf32>
    %57 = vector.shape_cast %56 : vector<4xf32> to vector<4x1xf32>
    %58 = vector.extract_strided_slice %11 {offsets = [0, 0], sizes = [4, 2], strides = [1, 1]} : vector<4x6xf32> to vector<4x2xf32>
    %cst_23 = arith.constant dense<0xFF800000> : vector<4xf32>
    %59 = vector.multi_reduction <maximumf>, %58, %cst_23 [1] : vector<4x2xf32> to vector<4xf32>
    %60 = vector.shape_cast %59 : vector<4xf32> to vector<4x1xf32>
    %61 = arith.subf %57, %60 : vector<4x1xf32>
    %62 = math.absf %61 : vector<4x1xf32>
    %c3_i32 = arith.constant 3 : i32
    %63 = vector.broadcast %c3_i32 : i32 to vector<4x1xi32>
    %64 = arith.muli %3, %63 : vector<4x1xi32>
    %c0_i32_24 = arith.constant 0 : i32
    %65 = vector.broadcast %c0_i32_24 : i32 to vector<4x1xi32>
    %66 = arith.addi %64, %65 : vector<4x1xi32>
    %c12_i32 = arith.constant 12 : i32
    %67 = vector.broadcast %c12_i32 : i32 to vector<4x1xi32>
    %68 = arith.cmpi slt, %66, %67 : vector<4x1xi32>
    %cst_25 = arith.constant 0.000000e+00 : f32
    %69 = vector.broadcast %cst_25 : f32 to vector<4x1xf32>
    %70 = arith.select %68, %62, %69 : vector<4x1xi1>, vector<4x1xf32>
    %71 = vector.shape_cast %70 : vector<4x1xf32> to vector<1x4x1xf32>
    %cst_26 = arith.constant dense<0.000000e+00> : vector<1xf32>
    %72 = vector.multi_reduction <add>, %71, %cst_26 [1, 2] : vector<1x4x1xf32> to vector<1xf32>
    %73 = vector.shape_cast %72 : vector<1xf32> to vector<1x1x1xf32>
    %74 = vector.extract %73[0, 0, 0] : f32 from vector<1x1x1xf32>
    %cst_27 = arith.constant 0.000000e+00 : f32
    %75 = arith.addf %cst_27, %74 : f32
    %76 = vector.extract_strided_slice %7 {offsets = [0, 2], sizes = [4, 2], strides = [1, 1]} : vector<4x6xf32> to vector<4x2xf32>
    %cst_28 = arith.constant dense<0xFF800000> : vector<4xf32>
    %77 = vector.multi_reduction <maximumf>, %76, %cst_28 [1] : vector<4x2xf32> to vector<4xf32>
    %78 = vector.shape_cast %77 : vector<4xf32> to vector<4x1xf32>
    %79 = vector.extract_strided_slice %11 {offsets = [0, 2], sizes = [4, 2], strides = [1, 1]} : vector<4x6xf32> to vector<4x2xf32>
    %cst_29 = arith.constant dense<0xFF800000> : vector<4xf32>
    %80 = vector.multi_reduction <maximumf>, %79, %cst_29 [1] : vector<4x2xf32> to vector<4xf32>
    %81 = vector.shape_cast %80 : vector<4xf32> to vector<4x1xf32>
    %82 = arith.subf %78, %81 : vector<4x1xf32>
    %83 = math.absf %82 : vector<4x1xf32>
    %c3_i32_30 = arith.constant 3 : i32
    %84 = vector.broadcast %c3_i32_30 : i32 to vector<4x1xi32>
    %85 = arith.muli %3, %84 : vector<4x1xi32>
    %c1_i32_31 = arith.constant 1 : i32
    %86 = vector.broadcast %c1_i32_31 : i32 to vector<4x1xi32>
    %87 = arith.addi %85, %86 : vector<4x1xi32>
    %c12_i32_32 = arith.constant 12 : i32
    %88 = vector.broadcast %c12_i32_32 : i32 to vector<4x1xi32>
    %89 = arith.cmpi slt, %87, %88 : vector<4x1xi32>
    %cst_33 = arith.constant 0.000000e+00 : f32
    %90 = vector.broadcast %cst_33 : f32 to vector<4x1xf32>
    %91 = arith.select %89, %83, %90 : vector<4x1xi1>, vector<4x1xf32>
    %92 = vector.shape_cast %91 : vector<4x1xf32> to vector<1x4x1xf32>
    %cst_34 = arith.constant dense<0.000000e+00> : vector<1xf32>
    %93 = vector.multi_reduction <add>, %92, %cst_34 [1, 2] : vector<1x4x1xf32> to vector<1xf32>
    %94 = vector.shape_cast %93 : vector<1xf32> to vector<1x1x1xf32>
    %95 = vector.extract %94[0, 0, 0] : f32 from vector<1x1x1xf32>
    %96 = arith.addf %75, %95 : f32
    %97 = vector.extract_strided_slice %7 {offsets = [0, 4], sizes = [4, 2], strides = [1, 1]} : vector<4x6xf32> to vector<4x2xf32>
    %cst_35 = arith.constant dense<0xFF800000> : vector<4xf32>
    %98 = vector.multi_reduction <maximumf>, %97, %cst_35 [1] : vector<4x2xf32> to vector<4xf32>
    %99 = vector.shape_cast %98 : vector<4xf32> to vector<4x1xf32>
    %100 = vector.extract_strided_slice %11 {offsets = [0, 4], sizes = [4, 2], strides = [1, 1]} : vector<4x6xf32> to vector<4x2xf32>
    %cst_36 = arith.constant dense<0xFF800000> : vector<4xf32>
    %101 = vector.multi_reduction <maximumf>, %100, %cst_36 [1] : vector<4x2xf32> to vector<4xf32>
    %102 = vector.shape_cast %101 : vector<4xf32> to vector<4x1xf32>
    %103 = arith.subf %99, %102 : vector<4x1xf32>
    %104 = math.absf %103 : vector<4x1xf32>
    %c3_i32_37 = arith.constant 3 : i32
    %105 = vector.broadcast %c3_i32_37 : i32 to vector<4x1xi32>
    %106 = arith.muli %3, %105 : vector<4x1xi32>
    %c2_i32_38 = arith.constant 2 : i32
    %107 = vector.broadcast %c2_i32_38 : i32 to vector<4x1xi32>
    %108 = arith.addi %106, %107 : vector<4x1xi32>
    %c12_i32_39 = arith.constant 12 : i32
    %109 = vector.broadcast %c12_i32_39 : i32 to vector<4x1xi32>
    %110 = arith.cmpi slt, %108, %109 : vector<4x1xi32>
    %cst_40 = arith.constant 0.000000e+00 : f32
    %111 = vector.broadcast %cst_40 : f32 to vector<4x1xf32>
    %112 = arith.select %110, %104, %111 : vector<4x1xi1>, vector<4x1xf32>
    %113 = vector.shape_cast %112 : vector<4x1xf32> to vector<1x4x1xf32>
    %cst_41 = arith.constant dense<0.000000e+00> : vector<1xf32>
    %114 = vector.multi_reduction <add>, %113, %cst_41 [1, 2] : vector<1x4x1xf32> to vector<1xf32>
    %115 = vector.shape_cast %114 : vector<1xf32> to vector<1x1x1xf32>
    %116 = vector.extract %115[0, 0, 0] : f32 from vector<1x1x1xf32>
    %117 = arith.addf %96, %116 : f32
    %c0_42 = arith.constant 0 : index
    %c0_43 = arith.constant 0 : index
    %c1 = arith.constant 1 : index
    %118 = memref.load %arg4[%c0_42, %c0_43, %c1] : memref<1x1x3xf32, #tpu.memory_space<smem>>
    memref.store %117, %arg4[%c0_42, %c0_43, %c1] : memref<1x1x3xf32, #tpu.memory_space<smem>>
    %119 = arith.subf %7, %11 : vector<4x6xf32>
    %120 = math.absf %119 : vector<4x6xf32>
    %c6_i32 = arith.constant 6 : i32
    %121 = vector.broadcast %c6_i32 : i32 to vector<4x1xi32>
    %122 = arith.muli %3, %121 : vector<4x1xi32>
    %123 = tpu.iota {dimensions = array<i32: 1>} : vector<4x6xi32>
    %124 = vector.broadcast %122 : vector<4x1xi32> to vector<4x6xi32>
    %125 = arith.addi %124, %123 : vector<4x6xi32>
    %c24_i32 = arith.constant 24 : i32
    %126 = vector.broadcast %c24_i32 : i32 to vector<4x6xi32>
    %127 = arith.cmpi slt, %125, %126 : vector<4x6xi32>
    %cst_44 = arith.constant 0.000000e+00 : f32
    %128 = vector.broadcast %cst_44 : f32 to vector<4x6xf32>
    %129 = arith.select %127, %120, %128 : vector<4x6xi1>, vector<4x6xf32>
    %130 = vector.shape_cast %129 : vector<4x6xf32> to vector<1x4x6xf32>
    %cst_45 = arith.constant dense<0.000000e+00> : vector<1xf32>
    %131 = vector.multi_reduction <add>, %130, %cst_45 [1, 2] : vector<1x4x6xf32> to vector<1xf32>
    %132 = vector.shape_cast %131 : vector<1xf32> to vector<1x1x1xf32>
    %133 = vector.extract %132[0, 0, 0] : f32 from vector<1x1x1xf32>
    %c0_46 = arith.constant 0 : index
    %c0_47 = arith.constant 0 : index
    %c2 = arith.constant 2 : index
    %134 = memref.load %arg4[%c0_46, %c0_47, %c2] : memref<1x1x3xf32, #tpu.memory_space<smem>>
    memref.store %133, %arg4[%c0_46, %c0_47, %c2] : memref<1x1x3xf32, #tpu.memory_space<smem>>
    return
  }
  func.func @transform_0(%arg0: i32, %arg1: i32) -> (i32, i32, i32, i32) {
    %c0_i32 = arith.constant 0 : i32
    %c0_i32_0 = arith.constant 0 : i32
    %c0_i32_1 = arith.constant 0 : i32
    return %arg0, %arg1, %c0_i32, %c0_i32_0 : i32, i32, i32, i32
  }
  func.func @transform_1(%arg0: i32, %arg1: i32) -> (i32, i32, i32, i32) {
    %c0_i32 = arith.constant 0 : i32
    %c0_i32_0 = arith.constant 0 : i32
    %c0_i32_1 = arith.constant 0 : i32
    return %arg0, %arg1, %c0_i32, %c0_i32_0 : i32, i32, i32, i32
  }
  func.func @transform_2(%arg0: i32, %arg1: i32) -> (i32, i32, i32) {
    %c1_i32 = arith.constant 1 : i32
    %0 = arith.muli %arg0, %c1_i32 : i32
    %1 = arith.addi %0, %arg1 : i32
    %c0_i32 = arith.constant 0 : i32
    %c0_i32_0 = arith.constant 0 : i32
    %c0_i32_1 = arith.constant 0 : i32
    return %1, %c0_i32, %c0_i32_0 : i32, i32, i32
  }
}

</mosaic_0001>

<llo_original>
// kernel: multi_window_shape_loss.1
$region0: #{multi_window_shape_loss.1}
  #allocation0 [shape = 'u32[]', space=smem, size = 0x4, offset = 0x4, fixed_abs, tag = 'smem constant byte address 0x4 - core index']
  #allocation1 [shape = 'u32[72,128]{1,0:T(1,128)}', space=vmem, size = 0x9000, scoped, tag = 'internal scratch']
  %s0 = inlined_call_operand.vmem [shape: f32[2,4,6,100], index: 0, kind: input, shape index: {}]
  %s1 = inlined_call_operand.vmem [shape: f32[2,4,6,100], index: 1, kind: input, shape index: {}]
  %s2 = inlined_call_operand.vmem [shape: f32[2,1,3], index: 2, kind: output, shape index: {}]
  %s3 = sld [smem:[#allocation0]]
  $region41: #{multi_window_shape_loss.1} parent=0
    _
  %s5 = ssub.s32 1, %s3
  %s6 = scalar_select 0, %s5, %s3
  $region1: #{multi_window_shape_loss.1} parent=0
    #allocation2 [shape = 'u8[1024]{0}', space=smem, size = 0x400, scoped, tag = 'output window, operand 0']
    #allocation3 [shape = 's32[2]{0}', space=sflag, size = 0x8, scoped, tag = 'scoped memory for multi_window_shape_loss.1']
    %7 = vsyncpa [#allocation3], 0
    %s8 = scalar_lea.sflag [#allocation3], 1
    %9 = vsyncpa %s8, 0
    loop: start=0, step=1, limit=4
    $region2: #{multi_window_shape_loss.1} parent=1 // loop_pre_header
      _
    $region3: #{multi_window_shape_loss.1} parent=1 // loop_header
      %s11 = sphi 0, %s15
      %p12 = scmp.ge.s32.totalorder %s11, 4
      %s18 = sphi 0, %s30
      %s19 = sphi 0, %s26
      %s20 = sphi 0, %s18
      %s21 = sphi 0, %s19
      %s22 = sphi 0, %s20
      %s23 = sphi 0, %s21
      %s35 = sphi 0, %s37
      %s38 = sphi 0, %s35
      %s39 = sphi 0, %s38
      %s55 = sphi 0, %s39
      %s63 = sphi 0, %s65
      %s66 = sphi 0, %s63
      %s67 = sphi 0, %s66
      %s83 = sphi 0, %s67
      %s91 = sphi 0, %s93
      %s94 = sphi 0, %s91
      %s95 = sphi 0, %s94
      %s111 = sphi 0, %s95
    $region4: #{multi_window_shape_loss.1} parent=1 // loop_header_branch
      %14 = sbr.rel (%p12) target = $region8
    $region5: #{multi_window_shape_loss.1} parent=1 // loop_body
      %s16 = ssub.s32 %s11, 1
      %s17 = ssub.s32 %s11, 2
      %s24 = sadd.s32 1, %s19
      %p25 = scmp.ge.s32.totalorder %s24, 1
      %s26 = scalar_select %p25, 0, %s24
      %s27 = sadd.s32 1, %s18
      %s28 = scalar_select %p25, %s27, %s18
      %p29 = scmp.ge.s32.totalorder %s28, 2
      %s30 = scalar_select %p29, 0, %s28
      %s31 = ssub.s32 %s18, %s30
      %s32 = ssub.s32 %s19, %s26
      %s33 = sor.u32 %s31, %s32
      %p34 = scmp.eq.s32.totalorder %s33, 0
      %s36 = sadd.s32 %s35, 1
      %s37 = scalar_select %p34, %s35, %s36
      %p40 = pneg %p34
      %p41 = scmp.eq.s32.totalorder %s11, 1
      %p42 = por %p40, %p41
      %p43 = scmp.ne.s32.totalorder %s35, %s38
      %p44 = scmp.eq.s32.totalorder %s11, 0
      %p45 = por %p43, %p44
      %p46 = scmp.ne.s32.totalorder %s35, %s38
      %p47 = scmp.eq.s32.totalorder %s16, 1
      %p48 = por %p46, %p47
      %p49 = scmp.ne.s32.totalorder %s38, %s39
      %p50 = scmp.eq.s32.totalorder %s16, 0
      %p51 = por %p49, %p50
      %p52 = scmp.ne.s32.totalorder %s38, %s39
      %p53 = scmp.eq.s32.totalorder %s17, 1
      %p54 = por %p52, %p53
      %p56 = scmp.ne.s32.totalorder %s39, %s55
      %p57 = scmp.eq.s32.totalorder %s17, 0
      %p58 = por %p56, %p57
      %s59 = ssub.s32 %s18, %s30
      %s60 = ssub.s32 %s19, %s26
      %s61 = sor.u32 %s59, %s60
      %p62 = scmp.eq.s32.totalorder %s61, 0
      %s64 = sadd.s32 %s63, 1
      %s65 = scalar_select %p62, %s63, %s64
      %p68 = pneg %p62
      %p69 = scmp.eq.s32.totalorder %s11, 1
      %p70 = por %p68, %p69
      %p71 = scmp.ne.s32.totalorder %s63, %s66
      %p72 = scmp.eq.s32.totalorder %s11, 0
      %p73 = por %p71, %p72
      %p74 = scmp.ne.s32.totalorder %s63, %s66
      %p75 = scmp.eq.s32.totalorder %s16, 1
      %p76 = por %p74, %p75
      %p77 = scmp.ne.s32.totalorder %s66, %s67
      %p78 = scmp.eq.s32.totalorder %s16, 0
      %p79 = por %p77, %p78
      %p80 = scmp.ne.s32.totalorder %s66, %s67
      %p81 = scmp.eq.s32.totalorder %s17, 1
      %p82 = por %p80, %p81
      %p84 = scmp.ne.s32.totalorder %s67, %s83
      %p85 = scmp.eq.s32.totalorder %s17, 0
      %p86 = por %p84, %p85
      %s87 = sadd.s32 %s18, %s19
      %s88 = sadd.s32 %s30, %s26
      %s89 = ssub.s32 %s87, %s88
      %p90 = scmp.eq.s32.totalorder %s89, 0
      %s92 = sadd.s32 %s91, 1
      %s93 = scalar_select %p90, %s91, %s92
      %p96 = pneg %p90
      %p97 = scmp.eq.s32.totalorder %s11, 1
      %p98 = por %p96, %p97
      %p99 = scmp.ne.s32.totalorder %s91, %s94
      %p100 = scmp.eq.s32.totalorder %s11, 0
      %p101 = por %p99, %p100
      %p102 = scmp.ne.s32.totalorder %s91, %s94
      %p103 = scmp.eq.s32.totalorder %s16, 1
      %p104 = por %p102, %p103
      %p105 = scmp.ne.s32.totalorder %s94, %s95
      %p106 = scmp.eq.s32.totalorder %s16, 0
      %p107 = por %p105, %p106
      %p108 = scmp.ne.s32.totalorder %s94, %s95
      %p109 = scmp.eq.s32.totalorder %s17, 1
      %p110 = por %p108, %p109
      %p112 = scmp.ne.s32.totalorder %s95, %s111
      %p113 = scmp.eq.s32.totalorder %s17, 0
      %p114 = por %p112, %p113
      %p115 = scmp.le.s32.totalorder 1, %s11
      %p116 = scmp.lt.s32.totalorder %s11, 3
      %p117 = pnand %p115, %p116
      %p118 = pneg %p117
      // Predicated region
      $region9: #{multi_window_shape_loss.1} parent=5 // pred_check
        _
      $region10: #{multi_window_shape_loss.1} parent=5 // pred_check_branch
        %120 = sbr.rel (%p117) target = $region12
      $region11: #{multi_window_shape_loss.1} parent=5 // pred_region
        %s121 = ssub.s32 %s11, 1
      $region12: #{multi_window_shape_loss.1} parent=5 // pred_fallthru
        _
      %p122 = scmp.lt.s32.totalorder %s11, 2
      // Predicated region
      $region13: #{multi_window_shape_loss.1} parent=5 // pred_check
        %p123 = pneg %p122
      $region14: #{multi_window_shape_loss.1} parent=5 // pred_check_branch
        %125 = sbr.rel (%p123) target = $region16
      $region15: #{multi_window_shape_loss.1} parent=5 // pred_region
        // Predicated region
        $region17: #{multi_window_shape_loss.1} parent=15 // pred_check
          %p126 = pneg %p45
        $region18: #{multi_window_shape_loss.1} parent=15 // pred_check_branch
          %128 = sbr.rel (%p126) target = $region20
        $region19: #{multi_window_shape_loss.1} parent=15 // pred_region
          %s129 = smul.u32 4, %s19
          %p130 = scmp.lt.s32.totalorder %s18, 1
          %s131 = scalar_select %p130, %s18, 1
          %p132 = scmp.lt.s32.totalorder %s129, 3
          %s133 = scalar_select %p132, %s129, 3
          %s134 = smul.addr %s131, 4
          %s135 = sadd.s32 %s133, %s134
          %s136 = smul.addr %s135, 8
          %s137 = scalar_lea.vmem %s0, %s136
          %s138 = smul.u32 4, %s19
        $region20: #{multi_window_shape_loss.1} parent=15 // pred_fallthru
          _
        // Predicated region
        $region21: #{multi_window_shape_loss.1} parent=15 // pred_check
          %p139 = pneg %p73
        $region22: #{multi_window_shape_loss.1} parent=15 // pred_check_branch
          %141 = sbr.rel (%p139) target = $region24
        $region23: #{multi_window_shape_loss.1} parent=15 // pred_region
          %s142 = smul.u32 4, %s19
          %p143 = scmp.lt.s32.totalorder %s18, 1
          %s144 = scalar_select %p143, %s18, 1
          %p145 = scmp.lt.s32.totalorder %s142, 3
          %s146 = scalar_select %p145, %s142, 3
          %s147 = smul.addr %s144, 4
          %s148 = sadd.s32 %s146, %s147
          %s149 = smul.addr %s148, 8
          %s150 = scalar_lea.vmem %s1, %s149
          %s151 = smul.u32 4, %s19
        $region24: #{multi_window_shape_loss.1} parent=15 // pred_fallthru
          _
      $region16: #{multi_window_shape_loss.1} parent=5 // pred_fallthru
        _
      %p152 = scmp.le.s32.totalorder 1, %s11
      %p153 = scmp.lt.s32.totalorder %s11, 3
      %p154 = pnand %p152, %p153
      %p155 = pneg %p154
      // Predicated region
      $region25: #{multi_window_shape_loss.1} parent=5 // pred_check
        _
      $region26: #{multi_window_shape_loss.1} parent=5 // pred_check_branch
        %157 = sbr.rel (%p154) target = $region28
      $region27: #{multi_window_shape_loss.1} parent=5 // pred_region
        %s158 = ssub.s32 %s11, 1
        %s159 = smul.u32 4, %s21
        %p160 = scmp.lt.s32.totalorder %s20, 1
        %s161 = scalar_select %p160, %s20, 1
        %p162 = scmp.lt.s32.totalorder %s159, 3
        %s163 = scalar_select %p162, %s159, 3
        %s164 = smul.addr %s161, 4
        %s165 = sadd.s32 %s163, %s164
        %s166 = smul.addr %s165, 8
        %s167 = scalar_lea.vmem %s0, %s166
        %p168 = pneg %p51
        %p169 = pneg %p48
        %s170 = smul.u32 4, %s21
        %p171 = scmp.lt.s32.totalorder %s20, 1
        %s172 = scalar_select %p171, %s20, 1
        %p173 = scmp.lt.s32.totalorder %s170, 3
        %s174 = scalar_select %p173, %s170, 3
        %s175 = smul.addr %s172, 4
        %s176 = sadd.s32 %s174, %s175
        %s177 = smul.addr %s176, 8
        %s178 = scalar_lea.vmem %s1, %s177
        %p179 = pneg %p79
        %p180 = pneg %p76
        %p181 = pneg %p107
        %p182 = pneg %p104
        %s183 = sand.u32 %s94, 1
        %s184 = scalar_lea.sflag [#allocation3], %s183
        %s185 = sand.u32 %s94, 1
        %s186 = smul.addr %s185, 128
        %s187 = scalar_lea.smem [#allocation2], %s186
        %s188 = smul.u32 4, %s21
        %p189 = scmp.lt.s32.totalorder %s20, 1
        %s190 = scalar_select %p189, %s20, 1
        %p191 = scmp.lt.s32.totalorder %s188, 3
        %s192 = scalar_select %p191, %s188, 3
        %s193 = smul.addr %s190, 4
        %s194 = sadd.s32 %s192, %s193
        %s195 = smul.addr %s194, 8
        %s196 = scalar_lea.vmem %s0, %s195
        %s197 = smul.u32 4, %s21
        %s198 = smul.u32 4, %s21
        %p199 = scmp.lt.s32.totalorder %s20, 1
        %s200 = scalar_select %p199, %s20, 1
        %p201 = scmp.lt.s32.totalorder %s198, 3
        %s202 = scalar_select %p201, %s198, 3
        %s203 = smul.addr %s200, 4
        %s204 = sadd.s32 %s202, %s203
        %s205 = smul.addr %s204, 8
        %s206 = scalar_lea.vmem %s1, %s205
        %s207 = smul.u32 4, %s21
        %s208 = sadd.s32 %s20, %s21
        %s209 = smul.u32 %s21, 4
        %v210 = vlaneseq
        %v211 = vshrl.u32 %v210, 7
        %v212 = vstv %s209
        %v213 = vadd.s32 %v212, %v211
        %v214 = vld [vmem:[%s196] sm:$0x3f]
        %v215 = vld [vmem:[%s196 + $0x8] sm:$0x3f]
        %v216 = vld [vmem:[%s196 + $0x10] sm:$0x3f]
        %v217 = vld [vmem:[%s196 + $0x18] sm:$0x3f]
        %v218 = vand.u32 2147483647, %v214
        %v219 = vand.u32 2147483647, %v215
        %v220 = vand.u32 2147483647, %v216
        %v221 = vand.u32 2147483647, %v217
        %vm222 = vcmask 816128
        %v223 = vsel %vm222, %v218, -inf
        %224 = vmax.xlane.f32.xlu0 %v223
        %v225 = vpop.xlane.xlu0 %224
        %v226 = vsel %vm222, %v219, -inf
        %227 = vmax.xlane.f32.xlu0 %v226
        %v228 = vpop.xlane.xlu0 %227
        %v229 = vsel %vm222, %v220, -inf
        %230 = vmax.xlane.f32.xlu0 %v229
        %v231 = vpop.xlane.xlu0 %230
        %v232 = vsel %vm222, %v221, -inf
        %233 = vmax.xlane.f32.xlu0 %v232
        %v234 = vpop.xlane.xlu0 %233
        %v235 = vld [vmem:[%s206] sm:$0x3f]
        %v236 = vld [vmem:[%s206 + $0x8] sm:$0x3f]
        %v237 = vld [vmem:[%s206 + $0x10] sm:$0x3f]
        %v238 = vld [vmem:[%s206 + $0x18] sm:$0x3f]
        %v239 = vand.u32 2147483647, %v235
        %v240 = vand.u32 2147483647, %v236
        %v241 = vand.u32 2147483647, %v237
        %v242 = vand.u32 2147483647, %v238
        %v243 = vsel %vm222, %v239, -inf
        %244 = vmax.xlane.f32.xlu0 %v243
        %v245 = vpop.xlane.xlu0 %244
        %v246 = vsel %vm222, %v240, -inf
        %247 = vmax.xlane.f32.xlu0 %v246
        %v248 = vpop.xlane.xlu0 %247
        %v249 = vsel %vm222, %v241, -inf
        %250 = vmax.xlane.f32.xlu0 %v249
        %v251 = vpop.xlane.xlu0 %250
        %v252 = vsel %vm222, %v242, -inf
        %253 = vmax.xlane.f32.xlu0 %v252
        %v254 = vpop.xlane.xlu0 %253
        %v259 = vlaneseq
        %v260 = vand.u32 %v259, 127
        %v261 = vperm.slane %v225, %v260
        %v262 = vperm.slane %v228, %v260
        %v263 = vperm.slane %v231, %v260
        %v264 = vperm.slane %v234, %v260
        %vm265 = vcmask 1041409
        %v266 = vsel %vm265, %v262, %v261
        %vm267 = vcmask 1042434
        %v268 = vsel %vm267, %v263, %v266
        %vm269 = vcmask 1043459
        %v270 = vsel %vm269, %v264, %v268
        %vm272 = vcmask 19456
        %v273 = vsel %vm272, %v270, -inf
        %274 = vmax.xlane.f32.xlu0 %v273
        %v275 = vpop.xlane.xlu0 %274
        %v280 = vperm.slane %v245, %v260
        %v281 = vperm.slane %v248, %v260
        %v282 = vperm.slane %v251, %v260
        %v283 = vperm.slane %v254, %v260
        %v284 = vsel %vm265, %v281, %v280
        %v285 = vsel %vm267, %v282, %v284
        %v286 = vsel %vm269, %v283, %v285
        %v288 = vsel %vm272, %v286, -inf
        %289 = vmax.xlane.f32.xlu0 %v288
        %v290 = vpop.xlane.xlu0 %289
        %v291 = vsub.f32 %v275, %v290
        %v292 = vand.u32 2147483647, %v291
        %v293 = vmul.u32 %v213, 2
        %vm294 = vcmp.lt.s32.totalorder %v293, 8
        %v295 = vsel %vm294, %v292, 0.0
        %vm296 = vcmask 3072
        %v297 = vsel %vm296, %v295, 0.0
        %298 = vadd.xlane.f32.xlu0 %v297
        %v299 = vpop.xlane.xlu0 %298
        %v300 = vrot.slane %v299, 4
        %v301 = vadd.f32 %v299, %v300
        %v302 = vrot.slane %v301, 2
        %v303 = vadd.f32 %v301, %v302
        %v304 = vrot.slane %v303, 1
        %v305 = vadd.f32 %v303, %v304
        %s306 = vtos %v305
        %s307 = sadd.f32 %s306, 0.0
        %vm308 = vcmask 44056
        %v309 = vsel %vm308, %v270, -inf
        %310 = vmax.xlane.f32.xlu0 %v309
        %v311 = vpop.xlane.xlu0 %310
        %v312 = vsel %vm308, %v286, -inf
        %313 = vmax.xlane.f32.xlu0 %v312
        %v314 = vpop.xlane.xlu0 %313
        %v315 = vsub.f32 %v311, %v314
        %v316 = vand.u32 2147483647, %v315
        %v317 = vadd.s32 %v293, 1
        %vm318 = vcmp.lt.s32.totalorder %v317, 8
        %v319 = vsel %vm318, %v316, 0.0
        %v320 = vsel %vm296, %v319, 0.0
        %321 = vadd.xlane.f32.xlu0 %v320
        %v322 = vpop.xlane.xlu0 %321
        %v323 = vrot.slane %v322, 4
        %v324 = vadd.f32 %v322, %v323
        %v325 = vrot.slane %v324, 2
        %v326 = vadd.f32 %v324, %v325
        %v327 = vrot.slane %v326, 1
        %v328 = vadd.f32 %v326, %v327
        %s329 = vtos %v328
        %s330 = sadd.f32 %s307, %s329
        %s331 = scalar_lea.smem %s187, 0 [#allocation2]
        %332 = sst [smem:[%s331]] %s330
        %vm333 = vcmask 11264
        %v334 = vsel %vm333, %v270, -inf
        %335 = vmax.xlane.f32.xlu0 %v334
        %v336 = vpop.xlane.xlu0 %335
        %v337 = vsel %vm333, %v286, -inf
        %338 = vmax.xlane.f32.xlu0 %v337
        %v339 = vpop.xlane.xlu0 %338
        %v340 = vsub.f32 %v336, %v339
        %v341 = vand.u32 2147483647, %v340
        %v342 = vmul.u32 %v213, 3
        %vm343 = vcmp.lt.s32.totalorder %v342, 12
        %v344 = vsel %vm343, %v341, 0.0
        %v345 = vsel %vm296, %v344, 0.0
        %346 = vadd.xlane.f32.xlu0 %v345
        %v347 = vpop.xlane.xlu0 %346
        %v348 = vrot.slane %v347, 4
        %v349 = vadd.f32 %v347, %v348
        %v350 = vrot.slane %v349, 2
        %v351 = vadd.f32 %v349, %v350
        %v352 = vrot.slane %v351, 1
        %v353 = vadd.f32 %v351, %v352
        %s354 = vtos %v353
        %s355 = sadd.f32 %s354, 0.0
        %vm356 = vcmask 27664
        %v357 = vsel %vm356, %v270, -inf
        %358 = vmax.xlane.f32.xlu0 %v357
        %v359 = vpop.xlane.xlu0 %358
        %v360 = vsel %vm356, %v286, -inf
        %361 = vmax.xlane.f32.xlu0 %v360
        %v362 = vpop.xlane.xlu0 %361
        %v363 = vsub.f32 %v359, %v362
        %v364 = vand.u32 2147483647, %v363
        %v365 = vadd.s32 %v342, 1
        %vm366 = vcmp.lt.s32.totalorder %v365, 12
        %v367 = vsel %vm366, %v364, 0.0
        %v368 = vsel %vm296, %v367, 0.0
        %369 = vadd.xlane.f32.xlu0 %v368
        %v370 = vpop.xlane.xlu0 %369
        %v371 = vrot.slane %v370, 4
        %v372 = vadd.f32 %v370, %v371
        %v373 = vrot.slane %v372, 2
        %v374 = vadd.f32 %v372, %v373
        %v375 = vrot.slane %v374, 1
        %v376 = vadd.f32 %v374, %v375
        %s377 = vtos %v376
        %s378 = sadd.f32 %s355, %s377
        %vm379 = vcmask 44064
        %v380 = vsel %vm379, %v270, -inf
        %381 = vmax.xlane.f32.xlu0 %v380
        %v382 = vpop.xlane.xlu0 %381
        %v383 = vsel %vm379, %v286, -inf
        %384 = vmax.xlane.f32.xlu0 %v383
        %v385 = vpop.xlane.xlu0 %384
        %v386 = vsub.f32 %v382, %v385
        %v387 = vand.u32 2147483647, %v386
        %v388 = vadd.s32 %v342, 2
        %vm389 = vcmp.lt.s32.totalorder %v388, 12
        %v390 = vsel %vm389, %v387, 0.0
        %v391 = vsel %vm296, %v390, 0.0
        %392 = vadd.xlane.f32.xlu0 %v391
        %v393 = vpop.xlane.xlu0 %392
        %v394 = vrot.slane %v393, 4
        %v395 = vadd.f32 %v393, %v394
        %v396 = vrot.slane %v395, 2
        %v397 = vadd.f32 %v395, %v396
        %v398 = vrot.slane %v397, 1
        %v399 = vadd.f32 %v397, %v398
        %s400 = vtos %v399
        %s401 = sadd.f32 %s378, %s400
        %s402 = scalar_lea.smem %s187, 1 [#allocation2]
        %403 = sst [smem:[%s402]] %s401
        %v404 = vsub.f32 %v225, %v245
        %v405 = vsub.f32 %v228, %v248
        %v406 = vsub.f32 %v231, %v251
        %v407 = vsub.f32 %v234, %v254
        %v408 = vand.u32 2147483647, %v404
        %v409 = vand.u32 2147483647, %v405
        %v410 = vand.u32 2147483647, %v406
        %v411 = vand.u32 2147483647, %v407
        %v412 = vmul.u32 %v213, 6
        %v413 = vadd.s32 %v412, %v260
        %vm414 = vcmp.lt.s32.totalorder %v413, 24
        %v419 = vperm.slane %v408, %v260
        %v420 = vperm.slane %v409, %v260
        %v421 = vperm.slane %v410, %v260
        %v422 = vperm.slane %v411, %v260
        %v423 = vsel %vm265, %v420, %v419
        %v424 = vsel %vm267, %v421, %v423
        %v425 = vsel %vm269, %v422, %v424
        %v427 = vsel %vm414, %v425, 0.0
        %vm428 = vcmask 44032
        %v429 = vsel %vm428, %v427, 0.0
        %430 = vadd.xlane.f32.xlu0 %v429
        %v431 = vpop.xlane.xlu0 %430
        %v432 = vrot.slane %v431, 4
        %v433 = vadd.f32 %v431, %v432
        %v434 = vrot.slane %v433, 2
        %v435 = vadd.f32 %v433, %v434
        %v436 = vrot.slane %v435, 1
        %v437 = vadd.f32 %v435, %v436
        %s438 = vtos %v437
        %s439 = scalar_lea.smem %s187, 2 [#allocation2]
        %440 = sst [smem:[%s439]] %s438
        %s441 = sand.u32 %s94, 1
        %s442 = scalar_lea.sflag [#allocation3], %s441
        %s443 = sand.u32 %s94, 1
        %s444 = smul.addr %s443, 128
        %s445 = scalar_lea.smem [#allocation2], %s444
        // Predicated region
        $region29: #{multi_window_shape_loss.1} parent=27 // pred_check
          %p446 = pneg %p104
        $region30: #{multi_window_shape_loss.1} parent=27 // pred_check_branch
          %448 = sbr.rel (%p446) target = $region32
        $region31: #{multi_window_shape_loss.1} parent=27 // pred_region
          %s449 = sadd.s32 %s20, %s21
          %451 = vsyncadd %s442, 0
          %s452 = scalar_lea.vmem %s2, %s449
          %s454 = sshll.u32 %s452, 4
          %s455 = int_to_ptr.vmem [resolvable:$true] %s454
          %457 = dma.smem_to_vmem %s445, 16, %s455, %s442
        $region32: #{multi_window_shape_loss.1} parent=27 // pred_fallthru
          _
      $region28: #{multi_window_shape_loss.1} parent=5 // pred_fallthru
        _
      %p458 = scmp.le.s32.totalorder 2, %s11
      // Predicated region
      $region33: #{multi_window_shape_loss.1} parent=5 // pred_check
        %p459 = pneg %p458
      $region34: #{multi_window_shape_loss.1} parent=5 // pred_check_branch
        %461 = sbr.rel (%p459) target = $region36
      $region35: #{multi_window_shape_loss.1} parent=5 // pred_region
        %s462 = ssub.s32 %s11, 2
        // Predicated region
        $region37: #{multi_window_shape_loss.1} parent=35 // pred_check
          %p463 = pneg %p110
        $region38: #{multi_window_shape_loss.1} parent=35 // pred_check_branch
          %465 = sbr.rel (%p463) target = $region40
        $region39: #{multi_window_shape_loss.1} parent=35 // pred_region
          %s466 = sand.u32 %s95, 1
          %s467 = scalar_lea.sflag [#allocation3], %s466
          %s468 = sand.u32 %s95, 1
          %s469 = smul.addr %s468, 128
          %s470 = scalar_lea.smem [#allocation2], %s469
          %472 = dma.done %s467, 16
        $region40: #{multi_window_shape_loss.1} parent=35 // pred_fallthru
          _
        %473 = sfence
      $region36: #{multi_window_shape_loss.1} parent=5 // pred_fallthru
        _
    $region6: #{multi_window_shape_loss.1} parent=1 // loop_footer
      %s15 = sadd.s32 1, %s11
    $region7: #{multi_window_shape_loss.1} parent=1 // loop_footer_branch
      %10 = sbr.rel target = $region3
    $region8: #{multi_window_shape_loss.1} parent=1 // loop_exit
      _
    %474 = vsyncpa [#allocation3], 1
    %s475 = scalar_lea.sflag [#allocation3], 1
    %476 = vsyncpa %s475, 1

</llo_original>
